<compile_context>
chip_gen: v7x
topology: tpu7x:2x2x1
jax: 0.10.0
libtpu: 0.0.40
codegen_flags: <defaults>
</compile_context>

<pallas_src>
import jax
import jax.numpy as jnp
import numpy as np
from jax.experimental import pallas as pl
from jax.experimental.pallas import tpu as pltpu


def _pass_through_kernel(x_ref, o_ref):
    """Identity: copy the resident VMEM tile to the output tile."""
    o_ref[...] = x_ref[...]


def _as_2d(x):
    """Collapse to (rows, last_dim) without changing memory order."""
    if x.ndim == 0:
        return x.reshape(1, 1)
    if x.ndim == 1:
        return x.reshape(1, x.shape[0])
    return x.reshape(-1, x.shape[-1])


def pass_through(x, *, tile_rows: int = 1024):
    """PassThrough.forward(x) == x, executed as a tiled Pallas copy kernel.

    tile_rows: row-tile size for the gridded path.  Keep it a multiple of 8
    (f32 sublane constraint); 512-2048 keeps the DMA pipeline near the HBM
    roofline on v5e/v6e/v7x while staying far below the scoped VMEM limit.
    """
    orig_shape = x.shape
    x2 = _as_2d(x)
    rows, cols = x2.shape
    itemsize = x2.dtype.itemsize
    # Advisory cost: pure copy -> bytes in + bytes out, zero flops.
    cost = pl.CostEstimate(flops=0, transcendentals=0,
                           bytes_accessed=2 * rows * cols * itemsize)

    single_block_budget = 8 * 1024 * 1024  # bytes per resident buffer
    if rows <= tile_rows and rows * cols * itemsize <= single_block_budget:
        # Small-input fast path: one block, no grid, zero per-step overhead.
        out2 = pl.pallas_call(
            _pass_through_kernel,
            out_shape=jax.ShapeDtypeStruct((rows, cols), x2.dtype),
            cost_estimate=cost,
        )(x2)
    else:
        # Large-input path: stream big row tiles (multiple of 8 sublanes).
        tile = max(8, (min(tile_rows, rows) // 8) * 8)
        out2 = pl.pallas_call(
            _pass_through_kernel,
            out_shape=jax.ShapeDtypeStruct((rows, cols), x2.dtype),
            grid_spec=pl.GridSpec(
                grid=(pl.cdiv(rows, tile),),
                in_specs=[pl.BlockSpec((tile, cols), lambda i: (i, 0))],
                out_specs=pl.BlockSpec((tile, cols), lambda i: (i, 0)),
            ),
            compiler_params=pltpu.CompilerParams(
                dimension_semantics=("parallel",)),  # shards across v7x's 2 TCs
            cost_estimate=cost,
        )(x2)
    return out2.reshape(orig_shape)


if __name__ == "__main__":
    key = jax.random.PRNGKey(0)
    k1, k2 = jax.random.split(key)

    # Small 4-D input (typical feature-map shape): single-block fast path.
    x_small = jax.random.normal(k1, (2, 4, 16, 16), dtype=jnp.float32)
    out_small = jax.block_until_ready(pass_through(x_small))
    np.testing.assert_array_equal(np.asarray(out_small), np.asarray(x_small))

    # Larger 2-D input: exercises the tiled grid path, including a ragged
    # (masked) last row tile.
    x_big = jax.random.normal(k2, (3248, 128), dtype=jnp.float32)
    out_big = jax.block_until_ready(pass_through(x_big, tile_rows=1024))
    np.testing.assert_array_equal(np.asarray(out_big), np.asarray(x_big))

    print("KERNEL_OK")
</pallas_src>

<mosaic_0001>
module attributes {stable_mosaic.version = 11 : i64} {
  func.func @_pass_through_kernel(%arg0: memref<128x16xf32, #tpu.memory_space<vmem>>, %arg1: memref<128x16xf32, #tpu.memory_space<vmem>>) attributes {dimension_semantics = [], scalar_prefetch = 0 : i64, scratch_operands = 0 : i64, tpu.core_type = #tpu.core_type<tc>} {
    %c0 = arith.constant 0 : index
    %c0_0 = arith.constant 0 : index
    %0 = vector.load %arg0[%c0, %c0_0] : memref<128x16xf32, #tpu.memory_space<vmem>>, vector<128x16xf32>
    %c0_1 = arith.constant 0 : index
    %c0_2 = arith.constant 0 : index
    %1 = vector.load %arg1[%c0_1, %c0_2] : memref<128x16xf32, #tpu.memory_space<vmem>>, vector<128x16xf32>
    tpu.vector_store %arg1[%c0_1, %c0_2], %0 {strides = array<i32>} : memref<128x16xf32, #tpu.memory_space<vmem>>, vector<128x16xf32>,
    return
  }
}

</mosaic_0001>

<llo_original>
// kernel: tpu_custom_call.1
$region0: #{tpu_custom_call.1}
  #allocation0 [shape = 'u32[]', space=smem, size = 0x4, offset = 0x4, fixed_abs, tag = 'smem constant byte address 0x4 - core index']
  #allocation1 [shape = 'u32[144,128]{1,0:T(1,128)}', space=vmem, size = 0x12000, scoped, tag = 'internal scratch']
  %s0 = inlined_call_operand.vmem [shape: f32[128,16], index: 0, kind: input, shape index: {}]
  %s1 = inlined_call_operand.vmem [shape: f32[128,16], index: 1, kind: output, shape index: {}]
  %s2 = sld [smem:[#allocation0]]
  $region14: #{tpu_custom_call.1} parent=0
    _
  %s4 = ssub.s32 1, %s2
  %s5 = scalar_select 0, %s4, %s2
  // Predicated region
  $region2: #{tpu_custom_call.1} parent=0 // pred_check
    _
  $region3: #{tpu_custom_call.1} parent=0 // pred_check_branch
    %7 = sbr.rel (0) target = $region5
  $region4: #{tpu_custom_call.1} parent=0 // pred_region
    _
  $region5: #{tpu_custom_call.1} parent=0 // pred_fallthru
    _
  %v8 = vld [vmem:[%s0] sm:$0xff]
  %v9 = vld [vmem:[%s0 + $0x8] sm:$0xff]
  %v10 = vld [vmem:[%s0 + $0x10] sm:$0xff]
  %v11 = vld [vmem:[%s0 + $0x18] sm:$0xff]
  %v12 = vld [vmem:[%s0 + $0x20] sm:$0xff]
  %v13 = vld [vmem:[%s0 + $0x28] sm:$0xff]
  %v14 = vld [vmem:[%s0 + $0x30] sm:$0xff]
  %v15 = vld [vmem:[%s0 + $0x38] sm:$0xff]
  %v16 = vld [vmem:[%s0 + $0x40] sm:$0xff]
  %v17 = vld [vmem:[%s0 + $0x48] sm:$0xff]
  %v18 = vld [vmem:[%s0 + $0x50] sm:$0xff]
  %v19 = vld [vmem:[%s0 + $0x58] sm:$0xff]
  %v20 = vld [vmem:[%s0 + $0x60] sm:$0xff]
  %v21 = vld [vmem:[%s0 + $0x68] sm:$0xff]
  %v22 = vld [vmem:[%s0 + $0x70] sm:$0xff]
  %v23 = vld [vmem:[%s0 + $0x78] sm:$0xff]
  %vm24 = vcmask 130048
  %25 = vst.msk [vmem:[%s1] sm:$0xff] %vm24, %v8
  %26 = vst.msk [vmem:[%s1 + $0x8] sm:$0xff] %vm24, %v9
  %27 = vst.msk [vmem:[%s1 + $0x10] sm:$0xff] %vm24, %v10
  %28 = vst.msk [vmem:[%s1 + $0x18] sm:$0xff] %vm24, %v11
  %29 = vst.msk [vmem:[%s1 + $0x20] sm:$0xff] %vm24, %v12
  %30 = vst.msk [vmem:[%s1 + $0x28] sm:$0xff] %vm24, %v13
  %31 = vst.msk [vmem:[%s1 + $0x30] sm:$0xff] %vm24, %v14
  %32 = vst.msk [vmem:[%s1 + $0x38] sm:$0xff] %vm24, %v15
  %33 = vst.msk [vmem:[%s1 + $0x40] sm:$0xff] %vm24, %v16
  %34 = vst.msk [vmem:[%s1 + $0x48] sm:$0xff] %vm24, %v17
  %35 = vst.msk [vmem:[%s1 + $0x50] sm:$0xff] %vm24, %v18
  %36 = vst.msk [vmem:[%s1 + $0x58] sm:$0xff] %vm24, %v19
  %37 = vst.msk [vmem:[%s1 + $0x60] sm:$0xff] %vm24, %v20
  %38 = vst.msk [vmem:[%s1 + $0x68] sm:$0xff] %vm24, %v21
  %39 = vst.msk [vmem:[%s1 + $0x70] sm:$0xff] %vm24, %v22
  %40 = vst.msk [vmem:[%s1 + $0x78] sm:$0xff] %vm24, %v23
  // Predicated region
  $region6: #{tpu_custom_call.1} parent=0 // pred_check
    _
  $region7: #{tpu_custom_call.1} parent=0 // pred_check_branch
    %42 = sbr.rel (0) target = $region9
  $region8: #{tpu_custom_call.1} parent=0 // pred_region
    _
  $region9: #{tpu_custom_call.1} parent=0 // pred_fallthru
    _
  // Predicated region
  $region10: #{tpu_custom_call.1} parent=0 // pred_check
    _
  $region11: #{tpu_custom_call.1} parent=0 // pred_check_branch
    %44 = sbr.rel (0) target = $region13
  $region12: #{tpu_custom_call.1} parent=0 // pred_region
    _
  $region13: #{tpu_custom_call.1} parent=0 // pred_fallthru
    _

</llo_original>
